<compile_context>
chip_gen: v7x
topology: tpu7x:2x2x1
jax: 0.10.0
libtpu: 0.0.40
codegen_flags: <defaults>
</compile_context>

<pallas_src>
from functools import partial

import jax
import jax.numpy as jnp
from jax.experimental import pallas as pl
from jax.experimental.pallas import tpu as pltpu  # noqa: F401  (kept for TPU-specific tuning hooks)


# ----------------------------- fused kernel ---------------------------------
def _qs_cross_attn_kernel(proto_ref, qx_ref, bias_ref, wqk_ref, wvp_ref, o_ref,
                          *, scale):
    """Single invocation over the whole (flattened) batch.

    proto_ref : (B*Nq, D)        prototype tokens           (compute dtype)
    qx_ref    : (B*Nk, D)        query-feature tokens        (compute dtype)
    bias_ref  : (B*Nq, B*Nk) f32 additive bias: user mask (-1e4) on the
                                 block-diagonal, -1e30 on cross-batch blocks
    wqk_ref   : (D, D)           folded Wq @ Wk^T            (compute dtype)
    wvp_ref   : (D, D)           folded Wv @ Wproj           (compute dtype)
    o_ref     : (B*Nq, D) f32
    """
    proto = proto_ref[...]
    qx = qx_ref[...]

    # Folded q-side projection: proto @ (Wq Wk^T)            -> (B*Nq, D)
    qk = jnp.dot(proto, wqk_ref[...], preferred_element_type=jnp.float32)
    # Folded v-side projection: q_x @ (Wv Wproj)             -> (B*Nk, D)
    vp = jnp.dot(qx, wvp_ref[...], preferred_element_type=jnp.float32)

    # Scores over the flattened batch; block-diagonal structure is enforced
    # purely by the additive bias (cross-batch -> -1e30 -> prob exactly 0).
    s = jax.lax.dot_general(qk, qx.astype(jnp.float32),
                            (((1,), (1,)), ((), ())),
                            preferred_element_type=jnp.float32) * scale
    s = s + bias_ref[...]                                    # (B*Nq, B*Nk)

    # fp32 softmax (max-subtracted); fully-masked rows degenerate to a uniform
    # distribution over their own batch's keys, same as the torch reference.
    s = s - jnp.max(s, axis=-1, keepdims=True)
    p = jnp.exp(s)
    p = p * pl.reciprocal(jnp.sum(p, axis=-1, keepdims=True), approx=False)

    # attn @ v1, with the output projection already folded into vp.
    o_ref[...] = jnp.dot(p, vp, preferred_element_type=jnp.float32)


# ----------------------------- python wrapper --------------------------------
def _build_bias(qry_attn_mask, B, Nq, Nk):
    """Additive bias (B*Nq, B*Nk): torch's (~mask)*-1e4 on the block diagonal,
    -1e30 on cross-batch blocks (exp underflows to exactly 0)."""
    if qry_attn_mask is None:
        within = jnp.zeros((B, Nk), jnp.float32)
    else:
        mask = qry_attn_mask.reshape(B, Nk)
        within = jnp.where(mask, 0.0, -10000.0).astype(jnp.float32)
    same = jnp.eye(B, dtype=bool)                                  # (B, B)
    bias = jnp.where(same[:, None, :, None],                       # (B,1,B,1)
                     within[None, None, :, :],                     # (1,1,B,Nk)
                     jnp.float32(-1e30))                           # (B,1,B,Nk)
    return jnp.broadcast_to(bias, (B, Nq, B, Nk)).reshape(B * Nq, B * Nk)


@partial(jax.jit, static_argnames=("compute_dtype",))
def qs_cross_attention(prototype, q_x, qry_attn_mask, wq, wk, wv, wproj,
                       compute_dtype=jnp.bfloat16):
    """Forward of QSCrossAttention (num_heads == 1, no qkv bias, eval mode).

    prototype      : (B, Nq, D) float32
    q_x            : (B, Nk, D) float32
    qry_attn_mask  : (B, Nk) bool (True == attend) or None
    wq/wk/wv/wproj : (D, D) float32, (in_features, out_features) layout
                     (i.e. the TRANSPOSE of nn.Linear.weight)
    compute_dtype  : dtype of MXU operands (bf16 default; fp32 for exact parity)
    """
    B, Nq, D = prototype.shape
    Nk = q_x.shape[1]
    scale = D ** -0.5                       # qk_scale=None -> head_dim ** -0.5

    # Fold the call-invariant weights once (fp32), then cast.
    wqk = (wq @ wk.T).astype(compute_dtype)         # scores weight
    wvp = (wv @ wproj).astype(compute_dtype)        # value+proj weight

    proto_flat = prototype.reshape(B * Nq, D).astype(compute_dtype)
    qx_flat = q_x.reshape(B * Nk, D).astype(compute_dtype)
    bias = _build_bias(qry_attn_mask, B, Nq, Nk)

    # Gridless call: every operand is a whole-array VMEM block (total working
    # set ~20 KB, far under VMEM on v5e/v6e/v7x), no pipeline / grid overhead.
    out_flat = pl.pallas_call(
        partial(_qs_cross_attn_kernel, scale=scale),
        out_shape=jax.ShapeDtypeStruct((B * Nq, D), jnp.float32),
    )(proto_flat, qx_flat, bias, wqk, wvp)

    return out_flat.reshape(B, Nq, D)


# ----------------------------- pure-JAX reference ----------------------------
def qs_cross_attention_ref(prototype, q_x, qry_attn_mask, wq, wk, wv, wproj):
    D = prototype.shape[-1]
    scale = D ** -0.5
    q1 = prototype @ wq
    k1 = q_x @ wk
    v1 = q_x @ wv
    attn = jnp.einsum("bqd,bkd->bqk", q1, k1) * scale
    if qry_attn_mask is not None:
        attn = attn + (~qry_attn_mask).astype(jnp.float32)[:, None, :] * -10000.0
    attn = jax.nn.softmax(attn, axis=-1)
    x1 = jnp.einsum("bqk,bkd->bqd", attn, v1)
    return x1 @ wproj


# ----------------------------- demo ------------------------------------------
if __name__ == "__main__":
    # Shapes consistent with IPMT usage: prototype (B,1,D) attends over the
    # HW = 8*8 = 64 flattened query tokens, D = embed_dims = 32, B = 2.
    DIM, B, NQ, NK = 32, 2, 1, 64

    key = jax.random.PRNGKey(0)
    kp, kq, km, k1, k2, k3, k4 = jax.random.split(key, 7)
    prototype = jax.random.normal(kp, (B, NQ, DIM), jnp.float32)
    q_x = jax.random.normal(kq, (B, NK, DIM), jnp.float32)
    qry_attn_mask = jax.random.uniform(km, (B, NK)) > 0.3      # True == attend
    wq = 0.1 * jax.random.normal(k1, (DIM, DIM), jnp.float32)
    wk = 0.1 * jax.random.normal(k2, (DIM, DIM), jnp.float32)
    wv = 0.1 * jax.random.normal(k3, (DIM, DIM), jnp.float32)
    wproj = 0.1 * jax.random.normal(k4, (DIM, DIM), jnp.float32)

    ref = qs_cross_attention_ref(prototype, q_x, qry_attn_mask, wq, wk, wv, wproj)

    # fp32 path: matches the reference up to fp32 accumulation-order noise.
    out_f32 = qs_cross_attention(prototype, q_x, qry_attn_mask, wq, wk, wv, wproj,
                                 compute_dtype=jnp.float32)
    jax.block_until_ready(out_f32)
    assert out_f32.shape == (B, NQ, DIM)
    assert jnp.allclose(out_f32, ref, atol=1e-4, rtol=1e-4), float(
        jnp.max(jnp.abs(out_f32 - ref)))

    # No-mask path (qry_attn_mask is None in some IPMT call-sites).
    out_nomask = qs_cross_attention(prototype, q_x, None, wq, wk, wv, wproj,
                                    compute_dtype=jnp.float32)
    ref_nomask = qs_cross_attention_ref(prototype, q_x, None, wq, wk, wv, wproj)
    jax.block_until_ready(out_nomask)
    assert jnp.allclose(out_nomask, ref_nomask, atol=1e-4, rtol=1e-4)

    # Default bf16-operand path (fp32 accumulation): looser tolerance, as the
    # performance review prescribes for the dtype change.
    out_bf16 = qs_cross_attention(prototype, q_x, qry_attn_mask, wq, wk, wv, wproj)
    jax.block_until_ready(out_bf16)
    assert out_bf16.shape == (B, NQ, DIM)
    assert jnp.allclose(out_bf16, ref, atol=2e-2, rtol=2e-2), float(
        jnp.max(jnp.abs(out_bf16 - ref)))

    print("KERNEL_OK")
</pallas_src>

<mosaic_0001>
module attributes {stable_mosaic.version = 11 : i64} {
  func.func @_qs_cross_attn_kernel(%arg0: memref<2x32xf32, #tpu.memory_space<vmem>>, %arg1: memref<128x32xf32, #tpu.memory_space<vmem>>, %arg2: memref<2x128xf32, #tpu.memory_space<vmem>>, %arg3: memref<32x32xf32, #tpu.memory_space<vmem>>, %arg4: memref<32x32xf32, #tpu.memory_space<vmem>>, %arg5: memref<2x32xf32, #tpu.memory_space<vmem>>) attributes {dimension_semantics = [], scalar_prefetch = 0 : i64, scratch_operands = 0 : i64, tpu.core_type = #tpu.core_type<tc>} {
    %c0 = arith.constant 0 : index
    %c0_0 = arith.constant 0 : index
    %0 = vector.load %arg0[%c0, %c0_0] : memref<2x32xf32, #tpu.memory_space<vmem>>, vector<2x32xf32>
    %c0_1 = arith.constant 0 : index
    %c0_2 = arith.constant 0 : index
    %1 = vector.load %arg1[%c0_1, %c0_2] : memref<128x32xf32, #tpu.memory_space<vmem>>, vector<128x32xf32>
    %c0_3 = arith.constant 0 : index
    %c0_4 = arith.constant 0 : index
    %2 = vector.load %arg3[%c0_3, %c0_4] : memref<32x32xf32, #tpu.memory_space<vmem>>, vector<32x32xf32>
    %cst = arith.constant dense<0.000000e+00> : vector<2x32xf32>
    %3 = tpu.matmul %0, %2, %cst {dimension_numbers = #tpu.dot_dimension_numbers<[1], [0], [0], [1], [0, 0, 1, 1], [], []>} : vector<2x32xf32>, vector<32x32xf32>, vector<2x32xf32> -> vector<2x32xf32>
    %c0_5 = arith.constant 0 : index
    %c0_6 = arith.constant 0 : index
    %4 = vector.load %arg4[%c0_5, %c0_6] : memref<32x32xf32, #tpu.memory_space<vmem>>, vector<32x32xf32>
    %cst_7 = arith.constant dense<0.000000e+00> : vector<128x32xf32>
    %5 = tpu.matmul %1, %4, %cst_7 {dimension_numbers = #tpu.dot_dimension_numbers<[1], [0], [0], [1], [0, 0, 1, 1], [], []>} : vector<128x32xf32>, vector<32x32xf32>, vector<128x32xf32> -> vector<128x32xf32>
    %cst_8 = arith.constant dense<0.000000e+00> : vector<2x128xf32>
    %6 = tpu.matmul %3, %1, %cst_8 {dimension_numbers = #tpu.dot_dimension_numbers<[1], [1], [0], [0], [0, 0, 1, 0], [], []>} : vector<2x32xf32>, vector<128x32xf32>, vector<2x128xf32> -> vector<2x128xf32>
    %cst_9 = arith.constant 0.176776692 : f32
    %7 = vector.broadcast %cst_9 : f32 to vector<2x128xf32>
    %8 = arith.mulf %6, %7 : vector<2x128xf32>
    %c0_10 = arith.constant 0 : index
    %c0_11 = arith.constant 0 : index
    %9 = vector.load %arg2[%c0_10, %c0_11] : memref<2x128xf32, #tpu.memory_space<vmem>>, vector<2x128xf32>
    %10 = arith.addf %8, %9 : vector<2x128xf32>
    %cst_12 = arith.constant dense<0xFF800000> : vector<2xf32>
    %11 = vector.multi_reduction <maximumf>, %10, %cst_12 [1] : vector<2x128xf32> to vector<2xf32>
    %12 = vector.shape_cast %11 : vector<2xf32> to vector<2x1xf32>
    %13 = vector.broadcast %12 : vector<2x1xf32> to vector<2x128xf32>
    %14 = arith.subf %10, %13 : vector<2x128xf32>
    %15 = math.exp %14 : vector<2x128xf32>
    %cst_13 = arith.constant dense<0.000000e+00> : vector<2xf32>
    %16 = vector.multi_reduction <add>, %15, %cst_13 [1] : vector<2x128xf32> to vector<2xf32>
    %17 = vector.shape_cast %16 : vector<2xf32> to vector<2x1xf32>
    %18 = tpu.reciprocal %17 : vector<2x1xf32> -> vector<2x1xf32>
    %19 = vector.broadcast %18 : vector<2x1xf32> to vector<2x128xf32>
    %20 = arith.mulf %15, %19 : vector<2x128xf32>
    %cst_14 = arith.constant dense<0.000000e+00> : vector<2x32xf32>
    %21 = tpu.matmul %20, %5, %cst_14 {dimension_numbers = #tpu.dot_dimension_numbers<[1], [0], [0], [1], [0, 0, 1, 1], [], []>} : vector<2x128xf32>, vector<128x32xf32>, vector<2x32xf32> -> vector<2x32xf32>
    %c0_15 = arith.constant 0 : index
    %c0_16 = arith.constant 0 : index
    %22 = vector.load %arg5[%c0_15, %c0_16] : memref<2x32xf32, #tpu.memory_space<vmem>>, vector<2x32xf32>
    tpu.vector_store %arg5[%c0_15, %c0_16], %21 {strides = array<i32>} : memref<2x32xf32, #tpu.memory_space<vmem>>, vector<2x32xf32>,
    return
  }
}

</mosaic_0001>

<llo_original>
// kernel: qs_cross_attention.1
$region0: #{qs_cross_attention.1}
  #allocation0 [shape = 'u32[]', space=smem, size = 0x4, offset = 0x4, fixed_abs, tag = 'smem constant byte address 0x4 - core index']
  #allocation1 [shape = 'u32[144,128]{1,0:T(1,128)}', space=vmem, size = 0x12000, scoped, tag = 'internal scratch']
  %s0 = inlined_call_operand.vmem [shape: f32[2,32], index: 0, kind: input, shape index: {}]
  %s1 = inlined_call_operand.vmem [shape: f32[128,32], index: 1, kind: input, shape index: {}]
  %s2 = inlined_call_operand.vmem [shape: f32[2,128], index: 2, kind: input, shape index: {}]
  %s3 = inlined_call_operand.vmem [shape: f32[32,32], index: 3, kind: input, shape index: {}]
  %s4 = inlined_call_operand.vmem [shape: f32[32,32], index: 4, kind: input, shape index: {}]
  %s5 = inlined_call_operand.hbm [shape: f32[2,32], index: 5, kind: output, shape index: {}]
  %s6 = sld [smem:[#allocation0]]
  $region30: #{qs_cross_attention.1} parent=0
    _
  %s8 = ssub.s32 1, %s6
  %s9 = scalar_select 0, %s8, %s6
  $region1: #{qs_cross_attention.1} parent=0
    #allocation2 [shape = 'u8[1024]{0}', space=vmem, size = 0x400, scoped, tag = 'output window, operand 0, single buffered']
    #allocation3 [shape = 's32[1]{0}', space=sflag, size = 0x4, scoped, tag = 'scoped memory for qs_cross_attention.1']
    %10 = vsyncpa [#allocation3], 0
    // Predicated region
    $region2: #{qs_cross_attention.1} parent=1 // pred_check
      _
    $region3: #{qs_cross_attention.1} parent=1 // pred_check_branch
      %12 = sbr.rel (0) target = $region5
    $region4: #{qs_cross_attention.1} parent=1 // pred_region
      _
    $region5: #{qs_cross_attention.1} parent=1 // pred_fallthru
      _
    // Predicated region
    $region6: #{qs_cross_attention.1} parent=1 // pred_check
      _
    $region7: #{qs_cross_attention.1} parent=1 // pred_check_branch
      %14 = sbr.rel (0) target = $region9
    $region8: #{qs_cross_attention.1} parent=1 // pred_region
      _
    $region9: #{qs_cross_attention.1} parent=1 // pred_fallthru
      _
    // Predicated region
    $region10: #{qs_cross_attention.1} parent=1 // pred_check
      _
    $region11: #{qs_cross_attention.1} parent=1 // pred_check_branch
      %16 = sbr.rel (0) target = $region13
    $region12: #{qs_cross_attention.1} parent=1 // pred_region
      _
    $region13: #{qs_cross_attention.1} parent=1 // pred_fallthru
      _
    // Predicated region
    $region14: #{qs_cross_attention.1} parent=1 // pred_check
      _
    $region15: #{qs_cross_attention.1} parent=1 // pred_check_branch
      %18 = sbr.rel (0) target = $region17
    $region16: #{qs_cross_attention.1} parent=1 // pred_region
      _
    $region17: #{qs_cross_attention.1} parent=1 // pred_fallthru
      _
    // Predicated region
    $region18: #{qs_cross_attention.1} parent=1 // pred_check
      _
    $region19: #{qs_cross_attention.1} parent=1 // pred_check_branch
      %20 = sbr.rel (0) target = $region21
    $region20: #{qs_cross_attention.1} parent=1 // pred_region
      _
    $region21: #{qs_cross_attention.1} parent=1 // pred_fallthru
      _
    %v21 = vld [vmem:[%s0] sm:$0x3]
    %v22 = vld [vmem:[%s1] sm:$0xff]
    %v23 = vld [vmem:[%s1 + $0x8] sm:$0xff]
    %v24 = vld [vmem:[%s1 + $0x10] sm:$0xff]
    %v25 = vld [vmem:[%s1 + $0x18] sm:$0xff]
    %v26 = vld [vmem:[%s1 + $0x20] sm:$0xff]
    %v27 = vld [vmem:[%s1 + $0x28] sm:$0xff]
    %v28 = vld [vmem:[%s1 + $0x30] sm:$0xff]
    %v29 = vld [vmem:[%s1 + $0x38] sm:$0xff]
    %v30 = vld [vmem:[%s1 + $0x40] sm:$0xff]
    %v31 = vld [vmem:[%s1 + $0x48] sm:$0xff]
    %v32 = vld [vmem:[%s1 + $0x50] sm:$0xff]
    %v33 = vld [vmem:[%s1 + $0x58] sm:$0xff]
    %v34 = vld [vmem:[%s1 + $0x60] sm:$0xff]
    %v35 = vld [vmem:[%s1 + $0x68] sm:$0xff]
    %v36 = vld [vmem:[%s1 + $0x70] sm:$0xff]
    %v37 = vld [vmem:[%s1 + $0x78] sm:$0xff]
    %v38 = vld [vmem:[%s3] sm:$0xff]
    %v39 = vld [vmem:[%s3 + $0x8] sm:$0xff]
    %v40 = vld [vmem:[%s3 + $0x10] sm:$0xff]
    %v41 = vld [vmem:[%s3 + $0x18] sm:$0xff]
    %vm42 = vcmask 261120
    %v44 = vsel %vm42, %v21, 0
    %46 = vmatprep.subr.mxu0 0.0
    %47 = vmatpush1.msra.mxu0 %v38
    %48 = vmatprep.subr.mxu0 0.0
    %49 = vmatpush1.msra.mxu0 %v39
    %50 = vmatprep.subr.mxu0 0.0
    %51 = vmatpush1.msra.mxu0 %v40
    %52 = vmatprep.subr.mxu0 0.0
    %53 = vmatpush1.msra.mxu0 %v41
    %54 = vmatprep.subr.mxu0 0.0
    %55 = vmatpush1.msra.mxu0 0.0
    %56 = vmatprep.subr.mxu0 0.0
    %57 = vmatpush1.msra.mxu0 0.0
    %58 = vmatprep.subr.mxu0 0.0
    %59 = vmatpush1.msra.mxu0 0.0
    %60 = vmatprep.subr.mxu0 0.0
    %61 = vmatpush1.msra.mxu0 0.0
    %62 = vmatprep.subr.mxu0 0.0
    %63 = vmatpush1.msra.mxu0 0.0
    %64 = vmatprep.subr.mxu0 0.0
    %65 = vmatpush1.msra.mxu0 0.0
    %66 = vmatprep.subr.mxu0 0.0
    %67 = vmatpush1.msra.mxu0 0.0
    %68 = vmatprep.subr.mxu0 0.0
    %69 = vmatpush1.msra.mxu0 0.0
    %70 = vmatprep.subr.mxu0 0.0
    %71 = vmatpush1.msra.mxu0 0.0
    %72 = vmatprep.subr.mxu0 0.0
    %73 = vmatpush1.msra.mxu0 0.0
    %74 = vmatprep.subr.mxu0 0.0
    %75 = vmatpush1.msra.mxu0 0.0
    %76 = vmatprep.subr.mxu0 0.0
    %77 = vmatpush1.msra.mxu0 0.0
    %78 = vmatprep.subr.mxu0 0.0
    %79 = vmatpush1.msra.mxu0 0.0
    %80 = vmatprep.subr.mxu0 0.0
    %81 = vmatpush1.msra.mxu0 0.0
    %82 = vmatprep.subr.mxu0 0.0
    %83 = vmatpush1.msra.mxu0 0.0
    %84 = vmatprep.subr.mxu0 0.0
    %85 = vmatpush1.msra.mxu0 0.0
    %86 = vmatprep.subr.mxu0 0.0
    %87 = vmatpush1.msra.mxu0 0.0
    %88 = vmatprep.subr.mxu0 0.0
    %89 = vmatpush1.msra.mxu0 0.0
    %90 = vmatprep.subr.mxu0 0.0
    %91 = vmatpush1.msra.mxu0 0.0
    %92 = vmatprep.subr.mxu0 0.0
    %93 = vmatpush1.msra.mxu0 0.0
    %94 = vmatprep.subr.mxu0 0.0
    %95 = vmatpush1.msra.mxu0 0.0
    %96 = vmatprep.subr.mxu0 0.0
    %97 = vmatpush1.msra.mxu0 0.0
    %98 = vmatprep.subr.mxu0 0.0
    %99 = vmatpush1.msra.mxu0 0.0
    %100 = vmatprep.subr.mxu0 0.0
    %101 = vmatpush1.msra.mxu0 0.0
    %102 = vmatprep.subr.mxu0 0.0
    %103 = vmatpush1.msra.mxu0 0.0
    %104 = vmatprep.subr.mxu0 0.0
    %105 = vmatpush1.msra.mxu0 0.0
    %106 = vmatprep.subr.mxu0 0.0
    %107 = vmatpush1.msra.mxu0 0.0
    %108 = vmatprep.subr.mxu0 0.0
    %109 = vmatpush1.msra.mxu0 0.0
    %110 = vmatprep.mubr.f32.mxu0 0.0
    %111 = vmatmul.mubr.f32.gmra.mrb[0].mxu0 %v44
    %v112 = vpop.f32.mrb[0].mxu0
    %v113 = vadd.f32 0.0, %v112
    %v114 = vpop.f32.mrb[0].mxu0
    %115 = vdwg.mxu0
    %v116 = vld [vmem:[%s4] sm:$0xff]
    %v117 = vld [vmem:[%s4 + $0x8] sm:$0xff]
    %v118 = vld [vmem:[%s4 + $0x10] sm:$0xff]
    %v119 = vld [vmem:[%s4 + $0x18] sm:$0xff]
    %v121 = vsel %vm42, %v22, 0
    %v124 = vsel %vm42, %v23, 0
    %v127 = vsel %vm42, %v24, 0
    %v130 = vsel %vm42, %v25, 0
    %v133 = vsel %vm42, %v26, 0
    %v136 = vsel %vm42, %v27, 0
    %v139 = vsel %vm42, %v28, 0
    %v142 = vsel %vm42, %v29, 0
    %v145 = vsel %vm42, %v30, 0
    %v148 = vsel %vm42, %v31, 0
    %v151 = vsel %vm42, %v32, 0
    %v154 = vsel %vm42, %v33, 0
    %v157 = vsel %vm42, %v34, 0
    %v160 = vsel %vm42, %v35, 0
    %v163 = vsel %vm42, %v36, 0
    %v166 = vsel %vm42, %v37, 0
    %168 = vmatprep.subr.mxu0 0.0
    %169 = vmatpush1.msra.mxu0 %v116
    %170 = vmatprep.subr.mxu0 0.0
    %171 = vmatpush1.msra.mxu0 %v117
    %172 = vmatprep.subr.mxu0 0.0
    %173 = vmatpush1.msra.mxu0 %v118
    %174 = vmatprep.subr.mxu0 0.0
    %175 = vmatpush1.msra.mxu0 %v119
    %176 = vmatprep.subr.mxu0 0.0
    %177 = vmatpush1.msra.mxu0 0.0
    %178 = vmatprep.subr.mxu0 0.0
    %179 = vmatpush1.msra.mxu0 0.0
    %180 = vmatprep.subr.mxu0 0.0
    %181 = vmatpush1.msra.mxu0 0.0
    %182 = vmatprep.subr.mxu0 0.0
    %183 = vmatpush1.msra.mxu0 0.0
    %184 = vmatprep.subr.mxu0 0.0
    %185 = vmatpush1.msra.mxu0 0.0
    %186 = vmatprep.subr.mxu0 0.0
    %187 = vmatpush1.msra.mxu0 0.0
    %188 = vmatprep.subr.mxu0 0.0
    %189 = vmatpush1.msra.mxu0 0.0
    %190 = vmatprep.subr.mxu0 0.0
    %191 = vmatpush1.msra.mxu0 0.0
    %192 = vmatprep.subr.mxu0 0.0
    %193 = vmatpush1.msra.mxu0 0.0
    %194 = vmatprep.subr.mxu0 0.0
    %195 = vmatpush1.msra.mxu0 0.0
    %196 = vmatprep.subr.mxu0 0.0
    %197 = vmatpush1.msra.mxu0 0.0
    %198 = vmatprep.subr.mxu0 0.0
    %199 = vmatpush1.msra.mxu0 0.0
    %200 = vmatprep.subr.mxu0 0.0
    %201 = vmatpush1.msra.mxu0 0.0
    %202 = vmatprep.subr.mxu0 0.0
    %203 = vmatpush1.msra.mxu0 0.0
    %204 = vmatprep.subr.mxu0 0.0
    %205 = vmatpush1.msra.mxu0 0.0
    %206 = vmatprep.subr.mxu0 0.0
    %207 = vmatpush1.msra.mxu0 0.0
    %208 = vmatprep.subr.mxu0 0.0
    %209 = vmatpush1.msra.mxu0 0.0
    %210 = vmatprep.subr.mxu0 0.0
    %211 = vmatpush1.msra.mxu0 0.0
    %212 = vmatprep.subr.mxu0 0.0
    %213 = vmatpush1.msra.mxu0 0.0
    %214 = vmatprep.subr.mxu0 0.0
    %215 = vmatpush1.msra.mxu0 0.0
    %216 = vmatprep.subr.mxu0 0.0
    %217 = vmatpush1.msra.mxu0 0.0
    %218 = vmatprep.subr.mxu0 0.0
    %219 = vmatpush1.msra.mxu0 0.0
    %220 = vmatprep.subr.mxu0 0.0
    %221 = vmatpush1.msra.mxu0 0.0
    %222 = vmatprep.subr.mxu0 0.0
    %223 = vmatpush1.msra.mxu0 0.0
    %224 = vmatprep.subr.mxu0 0.0
    %225 = vmatpush1.msra.mxu0 0.0
    %226 = vmatprep.subr.mxu0 0.0
    %227 = vmatpush1.msra.mxu0 0.0
    %228 = vmatprep.subr.mxu0 0.0
    %229 = vmatpush1.msra.mxu0 0.0
    %230 = vmatprep.subr.mxu0 0.0
    %231 = vmatpush1.msra.mxu0 0.0
    %232 = vmatprep.mubr.f32.mxu0 0.0
    %233 = vmatmul.mubr.f32.gmra.mrb[0].mxu0 %v121
    %v234 = vpop.f32.mrb[0].mxu0
    %v235 = vadd.f32 0.0, %v234
    %v236 = vpop.f32.mrb[0].mxu0
    %237 = vmatprep.mubr.f32.mxu0 0.0
    %238 = vmatmul.mubr.f32.gmra.mrb[0].mxu0 %v124
    %v239 = vpop.f32.mrb[0].mxu0
    %v240 = vadd.f32 0.0, %v239
    %v241 = vpop.f32.mrb[0].mxu0
    %242 = vmatprep.mubr.f32.mxu0 0.0
    %243 = vmatmul.mubr.f32.gmra.mrb[0].mxu0 %v127
    %v244 = vpop.f32.mrb[0].mxu0
    %v245 = vadd.f32 0.0, %v244
    %v246 = vpop.f32.mrb[0].mxu0
    %247 = vmatprep.mubr.f32.mxu0 0.0
    %248 = vmatmul.mubr.f32.gmra.mrb[0].mxu0 %v130
    %v249 = vpop.f32.mrb[0].mxu0
    %v250 = vadd.f32 0.0, %v249
    %v251 = vpop.f32.mrb[0].mxu0
    %252 = vmatprep.mubr.f32.mxu0 0.0
    %253 = vmatmul.mubr.f32.gmra.mrb[0].mxu0 %v133
    %v254 = vpop.f32.mrb[0].mxu0
    %v255 = vadd.f32 0.0, %v254
    %v256 = vpop.f32.mrb[0].mxu0
    %257 = vmatprep.mubr.f32.mxu0 0.0
    %258 = vmatmul.mubr.f32.gmra.mrb[0].mxu0 %v136
    %v259 = vpop.f32.mrb[0].mxu0
    %v260 = vadd.f32 0.0, %v259
    %v261 = vpop.f32.mrb[0].mxu0
    %262 = vmatprep.mubr.f32.mxu0 0.0
    %263 = vmatmul.mubr.f32.gmra.mrb[0].mxu0 %v139
    %v264 = vpop.f32.mrb[0].mxu0
    %v265 = vadd.f32 0.0, %v264
    %v266 = vpop.f32.mrb[0].mxu0
    %267 = vmatprep.mubr.f32.mxu0 0.0
    %268 = vmatmul.mubr.f32.gmra.mrb[0].mxu0 %v142
    %v269 = vpop.f32.mrb[0].mxu0
    %v270 = vadd.f32 0.0, %v269
    %v271 = vpop.f32.mrb[0].mxu0
    %272 = vmatprep.mubr.f32.mxu0 0.0
    %273 = vmatmul.mubr.f32.gmra.mrb[0].mxu0 %v145
    %v274 = vpop.f32.mrb[0].mxu0
    %v275 = vadd.f32 0.0, %v274
    %v276 = vpop.f32.mrb[0].mxu0
    %277 = vmatprep.mubr.f32.mxu0 0.0
    %278 = vmatmul.mubr.f32.gmra.mrb[0].mxu0 %v148
    %v279 = vpop.f32.mrb[0].mxu0
    %v280 = vadd.f32 0.0, %v279
    %v281 = vpop.f32.mrb[0].mxu0
    %282 = vmatprep.mubr.f32.mxu0 0.0
    %283 = vmatmul.mubr.f32.gmra.mrb[0].mxu0 %v151
    %v284 = vpop.f32.mrb[0].mxu0
    %v285 = vadd.f32 0.0, %v284
    %v286 = vpop.f32.mrb[0].mxu0
    %287 = vmatprep.mubr.f32.mxu0 0.0
    %288 = vmatmul.mubr.f32.gmra.mrb[0].mxu0 %v154
    %v289 = vpop.f32.mrb[0].mxu0
    %v290 = vadd.f32 0.0, %v289
    %v291 = vpop.f32.mrb[0].mxu0
    %292 = vmatprep.mubr.f32.mxu0 0.0
    %293 = vmatmul.mubr.f32.gmra.mrb[0].mxu0 %v157
    %v294 = vpop.f32.mrb[0].mxu0
    %v295 = vadd.f32 0.0, %v294
    %v296 = vpop.f32.mrb[0].mxu0
    %297 = vmatprep.mubr.f32.mxu0 0.0
    %298 = vmatmul.mubr.f32.gmra.mrb[0].mxu0 %v160
    %v299 = vpop.f32.mrb[0].mxu0
    %v300 = vadd.f32 0.0, %v299
    %v301 = vpop.f32.mrb[0].mxu0
    %302 = vmatprep.mubr.f32.mxu0 0.0
    %303 = vmatmul.mubr.f32.gmra.mrb[0].mxu0 %v163
    %v304 = vpop.f32.mrb[0].mxu0
    %v305 = vadd.f32 0.0, %v304
    %v306 = vpop.f32.mrb[0].mxu0
    %307 = vmatprep.mubr.f32.mxu0 0.0
    %308 = vmatmul.mubr.f32.gmra.mrb[0].mxu0 %v166
    %v309 = vpop.f32.mrb[0].mxu0
    %v310 = vadd.f32 0.0, %v309
    %v311 = vpop.f32.mrb[0].mxu0
    %312 = vdwg.mxu0
    %v314 = vsel %vm42, %v113, 0
    %316 = vmatprep.subr.mxu0 0.0
    %317 = vmatpush1.xpose.msra.mxu0 %v121
    %318 = vmatprep.subr.mxu0 0.0
    %319 = vmatpush1.xpose.msra.mxu0 %v124
    %320 = vmatprep.subr.mxu0 0.0
    %321 = vmatpush1.xpose.msra.mxu0 %v127
    %322 = vmatprep.subr.mxu0 0.0
    %323 = vmatpush1.xpose.msra.mxu0 %v130
    %324 = vmatprep.subr.mxu0 0.0
    %325 = vmatpush1.xpose.msra.mxu0 %v133
    %326 = vmatprep.subr.mxu0 0.0
    %327 = vmatpush1.xpose.msra.mxu0 %v136
    %328 = vmatprep.subr.mxu0 0.0
    %329 = vmatpush1.xpose.msra.mxu0 %v139
    %330 = vmatprep.subr.mxu0 0.0
    %331 = vmatpush1.xpose.msra.mxu0 %v142
    %332 = vmatprep.subr.mxu0 0.0
    %333 = vmatpush1.xpose.msra.mxu0 %v145
    %334 = vmatprep.subr.mxu0 0.0
    %335 = vmatpush1.xpose.msra.mxu0 %v148
    %336 = vmatprep.subr.mxu0 0.0
    %337 = vmatpush1.xpose.msra.mxu0 %v151
    %338 = vmatprep.subr.mxu0 0.0
    %339 = vmatpush1.xpose.msra.mxu0 %v154
    %340 = vmatprep.subr.mxu0 0.0
    %341 = vmatpush1.xpose.msra.mxu0 %v157
    %342 = vmatprep.subr.mxu0 0.0
    %343 = vmatpush1.xpose.msra.mxu0 %v160
    %344 = vmatprep.subr.mxu0 0.0
    %345 = vmatpush1.xpose.msra.mxu0 %v163
    %346 = vmatprep.subr.mxu0 0.0
    %347 = vmatpush1.xpose.msra.mxu0 %v166
    %348 = vmatprep.subr.mxu0 0.0
    %349 = vmatpush1.xpose.msra.mxu0 0.0
    %350 = vmatprep.subr.mxu0 0.0
    %351 = vmatpush1.xpose.msra.mxu0 0.0
    %352 = vmatprep.subr.mxu0 0.0
    %353 = vmatpush1.xpose.msra.mxu0 0.0
    %354 = vmatprep.subr.mxu0 0.0
    %355 = vmatpush1.xpose.msra.mxu0 0.0
    %356 = vmatprep.subr.mxu0 0.0
    %357 = vmatpush1.xpose.msra.mxu0 0.0
    %358 = vmatprep.subr.mxu0 0.0
    %359 = vmatpush1.xpose.msra.mxu0 0.0
    %360 = vmatprep.subr.mxu0 0.0
    %361 = vmatpush1.xpose.msra.mxu0 0.0
    %362 = vmatprep.subr.mxu0 0.0
    %363 = vmatpush1.xpose.msra.mxu0 0.0
    %364 = vmatprep.subr.mxu0 0.0
    %365 = vmatpush1.xpose.msra.mxu0 0.0
    %366 = vmatprep.subr.mxu0 0.0
    %367 = vmatpush1.xpose.msra.mxu0 0.0
    %368 = vmatprep.subr.mxu0 0.0
    %369 = vmatpush1.xpose.msra.mxu0 0.0
    %370 = vmatprep.subr.mxu0 0.0
    %371 = vmatpush1.xpose.msra.mxu0 0.0
    %372 = vmatprep.subr.mxu0 0.0
    %373 = vmatpush1.xpose.msra.mxu0 0.0
    %374 = vmatprep.subr.mxu0 0.0
    %375 = vmatpush1.xpose.msra.mxu0 0.0
    %376 = vmatprep.subr.mxu0 0.0
    %377 = vmatpush1.xpose.msra.mxu0 0.0
    %378 = vmatprep.subr.mxu0 0.0
    %379 = vmatpush1.xpose.msra.mxu0 0.0
    %380 = vmatprep.mubr.f32.mxu0 0.0
    %381 = vmatmul.mubr.f32.gmra.mrb[0].mxu0 %v314
    %v382 = vpop.f32.mrb[0].mxu0
    %v383 = vadd.f32 0.0, %v382
    %v384 = vpop.f32.mrb[0].mxu0
    %385 = vdwg.mxu0
    %v386 = vmul.f32 %v383, 0.17677669
    %v387 = vld [vmem:[%s2] sm:$0x3]
    %v388 = vadd.f32 %v386, %v387
    %vm389 = vcmask 1041408
    %v390 = vsel %vm389, %v388, -inf
    %391 = vmax.xlane.f32.xlu0 %v390
    %v392 = vpop.xlane.xlu0 %391
    %v393 = vsub.f32 %v388, %v392
    %v394 = vmul.f32 %v393, 1.442695
    %v395 = vpow.pop %v394
    %v396 = vsel %vm389, %v395, 0.0
    %397 = vadd.xlane.f32.xlu0 %v396
    %v398 = vpop.xlane.xlu0 %397
    %v399 = vrcp.pop %v398
    %v400 = vmul.f32 %v395, %v399
    %401 = vmatprep.subr.mxu0 0.0
    %402 = vmatpush1.msra.mxu0 %v235
    %403 = vmatprep.subr.mxu0 0.0
    %404 = vmatpush1.msra.mxu0 %v240
    %405 = vmatprep.subr.mxu0 0.0
    %406 = vmatpush1.msra.mxu0 %v245
    %407 = vmatprep.subr.mxu0 0.0
    %408 = vmatpush1.msra.mxu0 %v250
    %409 = vmatprep.subr.mxu0 0.0
    %410 = vmatpush1.msra.mxu0 %v255
    %411 = vmatprep.subr.mxu0 0.0
    %412 = vmatpush1.msra.mxu0 %v260
    %413 = vmatprep.subr.mxu0 0.0
    %414 = vmatpush1.msra.mxu0 %v265
    %415 = vmatprep.subr.mxu0 0.0
    %416 = vmatpush1.msra.mxu0 %v270
    %417 = vmatprep.subr.mxu0 0.0
    %418 = vmatpush1.msra.mxu0 %v275
    %419 = vmatprep.subr.mxu0 0.0
    %420 = vmatpush1.msra.mxu0 %v280
    %421 = vmatprep.subr.mxu0 0.0
    %422 = vmatpush1.msra.mxu0 %v285
    %423 = vmatprep.subr.mxu0 0.0
    %424 = vmatpush1.msra.mxu0 %v290
    %425 = vmatprep.subr.mxu0 0.0
    %426 = vmatpush1.msra.mxu0 %v295
    %427 = vmatprep.subr.mxu0 0.0
    %428 = vmatpush1.msra.mxu0 %v300
    %429 = vmatprep.subr.mxu0 0.0
    %430 = vmatpush1.msra.mxu0 %v305
    %431 = vmatprep.subr.mxu0 0.0
    %432 = vmatpush1.msra.mxu0 %v310
    %433 = vmatprep.subr.mxu0 0.0
    %434 = vmatpush1.msra.mxu0 0.0
    %435 = vmatprep.subr.mxu0 0.0
    %436 = vmatpush1.msra.mxu0 0.0
    %437 = vmatprep.subr.mxu0 0.0
    %438 = vmatpush1.msra.mxu0 0.0
    %439 = vmatprep.subr.mxu0 0.0
    %440 = vmatpush1.msra.mxu0 0.0
    %441 = vmatprep.subr.mxu0 0.0
    %442 = vmatpush1.msra.mxu0 0.0
    %443 = vmatprep.subr.mxu0 0.0
    %444 = vmatpush1.msra.mxu0 0.0
    %445 = vmatprep.subr.mxu0 0.0
    %446 = vmatpush1.msra.mxu0 0.0
    %447 = vmatprep.subr.mxu0 0.0
    %448 = vmatpush1.msra.mxu0 0.0
    %449 = vmatprep.subr.mxu0 0.0
    %450 = vmatpush1.msra.mxu0 0.0
    %451 = vmatprep.subr.mxu0 0.0
    %452 = vmatpush1.msra.mxu0 0.0
    %453 = vmatprep.subr.mxu0 0.0
    %454 = vmatpush1.msra.mxu0 0.0
    %455 = vmatprep.subr.mxu0 0.0
    %456 = vmatpush1.msra.mxu0 0.0
    %457 = vmatprep.subr.mxu0 0.0
    %458 = vmatpush1.msra.mxu0 0.0
    %459 = vmatprep.subr.mxu0 0.0
    %460 = vmatpush1.msra.mxu0 0.0
    %461 = vmatprep.subr.mxu0 0.0
    %462 = vmatpush1.msra.mxu0 0.0
    %463 = vmatprep.subr.mxu0 0.0
    %464 = vmatpush1.msra.mxu0 0.0
    %465 = vmatprep.mubr.f32.mxu0 0.0
    %466 = vmatmul.mubr.f32.gmra.mrb[0].mxu0 %v400
    %v467 = vpop.f32.mrb[0].mxu0
    %v468 = vadd.f32 0.0, %v467
    %v469 = vpop.f32.mrb[0].mxu0
    %470 = vdwg.mxu0
    %vm471 = vcmask 254976
    %472 = vst.msk [vmem:[#allocation2] sm:$0x3] %vm471, %v468
    // Predicated region
    $region22: #{qs_cross_attention.1} parent=1 // pred_check
      _
    $region23: #{qs_cross_attention.1} parent=1 // pred_check_branch
      %474 = sbr.rel (0) target = $region25
    $region24: #{qs_cross_attention.1} parent=1 // pred_region
      %s476 = ssub.s32 32, 32
      %477 = vsyncadd [#allocation3], %s476
      %s479 = sshll.u32 [#allocation2], 4
      %s480 = int_to_ptr.vmem [resolvable:$true] %s479
      %482 = dma.vmem_to_hbm [thread:$0]  %s480, 32, %s5, [#allocation3]
    $region25: #{qs_cross_attention.1} parent=1 // pred_fallthru
      _
    // Predicated region
    $region26: #{qs_cross_attention.1} parent=1 // pred_check
      _
    $region27: #{qs_cross_attention.1} parent=1 // pred_check_branch
      %484 = sbr.rel (0) target = $region29
    $region28: #{qs_cross_attention.1} parent=1 // pred_region
      %485 = dma.done [#allocation3], 32
    $region29: #{qs_cross_attention.1} parent=1 // pred_fallthru
      _
    %486 = vsyncpa [#allocation3], 1

</llo_original>
